<compile_context>
chip_gen: v7x
topology: tpu7x:2x2x1
jax: 0.10.0
libtpu: 0.0.40
codegen_flags: <defaults>
</compile_context>

<pallas_src>
import functools

import jax
import jax.numpy as jnp
from jax.experimental import pallas as pl
from jax.experimental.pallas import tpu as pltpu

KSIZE = 7        # conv kernel size
PAD = 3          # 'same' padding for kernel_size=7
M = 5            # number of attention maps (5 independent Conv2d(2,1,7))
LANE = 128       # TPU lane width


def _ceil_to(x, m):
    return -(-x // m) * m


def _vmem_capacity_bytes():
    """Physical per-core VMEM (generation-aware); conservative fallback = v7x."""
    try:
        cap = getattr(pltpu.get_tpu_info(), "vmem_capacity_bytes", None)
        if cap:
            return int(cap)
    except Exception:
        pass
    return 64 << 20


# ---------------------------------------------------------------------------
# Stage 1: level-sum + channel mean/max, lane-dense over flattened H*W.
# Grid = (B, spatial_tiles, channel_tiles); the channel axis is the reduction.
#   x_ref   : (1, L, cc, ts) input chunk (native dtype, accumulated in f32)
#   o_ref   : (1, 2, ts)     row 0 = channel mean, row 1 = channel max (f32)
#   sum_sc  : (1, ts) f32    running channel-SUM of the level-sum
#   max_sc  : (1, ts) f32    running channel-MAX of the level-sum
# ---------------------------------------------------------------------------
def _stage1_kernel(x_ref, o_ref, sum_sc, max_sc, *, c_total, c_block, mask_tail):
    c_idx = pl.program_id(2)
    n_c = pl.num_programs(2)

    x = x_ref[0].astype(jnp.float32)                 # (L, cc, ts)
    s = jnp.sum(x, axis=0)                           # level sum -> (cc, ts)

    if mask_tail:
        # cdiv channel grid: channels >= C in the last block are padding.
        ch = c_idx * c_block + jax.lax.broadcasted_iota(jnp.int32, (c_block, 1), 0)
        valid = ch < c_total
        s_sum = jnp.where(valid, s, 0.0)
        s_max = jnp.where(valid, s, -jnp.inf)
    else:
        s_sum = s
        s_max = s

    psum = jnp.sum(s_sum, axis=0, keepdims=True)     # (1, ts)
    pmax = jnp.max(s_max, axis=0, keepdims=True)     # (1, ts)

    @pl.when(c_idx == 0)
    def _init():
        sum_sc[...] = psum
        max_sc[...] = pmax

    @pl.when(c_idx != 0)
    def _accum():
        sum_sc[...] = sum_sc[...] + psum
        max_sc[...] = jnp.maximum(max_sc[...], pmax)

    @pl.when(c_idx == n_c - 1)
    def _finalize():
        o_ref[0] = jnp.concatenate(
            [sum_sc[...] * jnp.float32(1.0 / c_total), max_sc[...]], axis=0)


# ---------------------------------------------------------------------------
# Stage 2: 5x 7x7 'same' conv + softmax over the 5 maps, row-tiled.
#   w_ref  : SMEM (M*2*7*7,) flattened conv weights
#   xp_ref : (1, 2, H_pad+6, W+6) zero-padded [mean, max] maps (resident
#            across the row-tile axis)
#   o_ref  : (1, M, rows, W) one row-tile of the softmaxed attention maps
# ---------------------------------------------------------------------------
def _conv_softmax_kernel(w_ref, xp_ref, o_ref, *, rows, width):
    r0 = pl.multiple_of(pl.program_id(1) * rows, 8)

    # Shift-and-accumulate conv.  Loop order c -> kh -> kw -> oc: every shifted
    # window (the expensive lane shift) is computed once (98 total) and reused
    # by all 5 filters; the 5 SMEM weight reads per tap are hoisted ahead of
    # the 5 FMAs to keep the scalar slots off the critical path.
    # TODO(synk): if the conv ever becomes profile-visible (tiny C*L), im2col
    # the 98 taps into a (98, rows*width) operand and do a single MXU jnp.dot
    # against a (5, 98) weight matrix instead of 490 VPU FMAs.
    accs = [jnp.zeros((rows, width), jnp.float32) for _ in range(M)]
    for ci in range(2):
        for kh in range(KSIZE):
            xr = xp_ref[0, ci, pl.ds(r0 + kh, rows), :]          # (rows, W+6)
            for kw in range(KSIZE):
                xs = xr[:, kw:kw + width]                        # (rows, W)
                wv = [w_ref[((oc * 2 + ci) * KSIZE + kh) * KSIZE + kw]
                      for oc in range(M)]
                for oc in range(M):
                    accs[oc] = accs[oc] + wv[oc] * xs

    # Softmax over the M maps (PyTorch softmax(dim=1)); exact reciprocal so
    # the attention weights sum to 1 (correctness feedback).
    mval = accs[0]
    for a in accs[1:]:
        mval = jnp.maximum(mval, a)
    exps = [jnp.exp(a - mval) for a in accs]
    den = exps[0]
    for e in exps[1:]:
        den = den + e
    inv = pl.reciprocal(den, approx=False)
    for oc in range(M):
        o_ref[0, oc] = (exps[oc] * inv).astype(o_ref.dtype)


# ---------------------------------------------------------------------------
# Tile selection (padding- and generation-aware)
# ---------------------------------------------------------------------------
def _choose_stage1_tiles(B, L, C, HW, itemsize, budget_bytes):
    """(channel_tile, spatial_tile) for the stage-1 reduction.

    Byte math includes (sublane, 128) tile padding.  The spatial tile is a
    multiple of 128 (or the full H*W) so stage 1 stays lane-dense, and it is
    split in two for B == 1 so both v7x TensorCores get parallel work."""
    sub = 32 // itemsize                      # 8 (f32), 16 (bf16), 32 (int8)

    def blk_bytes(cc, ts):                    # double-buffered input block
        return 2 * L * _ceil_to(cc, sub) * _ceil_to(ts, LANE) * itemsize

    ts = HW
    if B < 2 and HW > LANE:                   # megacore coverage for batch-1
        ts = _ceil_to(-(-HW // 2), LANE)
    while ts > LANE and blk_bytes(min(C, sub), ts) > budget_bytes:
        ts = _ceil_to(ts // 2, LANE)          # shrink spatial tile to fit

    cc = budget_bytes // (2 * L * _ceil_to(ts, LANE) * itemsize)
    cc = max(sub, (cc // sub) * sub)          # multiple of the sublane count
    if cc >= C:
        cc = C                                # full dim is always legal
    return cc, ts


def _choose_row_tile(H, W):
    """Conv output-row tile: multiple of 8, sized so the 5 f32 accumulators
    (5 * rows * ceil(W,128) elements) stay within the vreg file."""
    lanes = _ceil_to(W, LANE)
    r = max(8, min(64, (8192 // lanes) // 8 * 8))
    return min(r, _ceil_to(H, 8))


# ---------------------------------------------------------------------------
# Wrapper
# ---------------------------------------------------------------------------
def spatial_attention_forward(inputs, weights, num_levels):
    """inputs: (B, L, C, H, W) float (f32 or bf16); weights: (M, 2, 7, 7).
    Returns (B, M, 1, H, W) f32 -- identical semantics to the PyTorch module."""
    B, L, C, H, W = inputs.shape
    assert L == num_levels
    assert weights.shape == (M, 2, KSIZE, KSIZE)
    HW = H * W
    itemsize = jnp.dtype(inputs.dtype).itemsize

    vmem_cap = _vmem_capacity_bytes()
    # Double-buffered stage-1 input-block budget: ~16 MiB on v7x (64 MiB VMEM),
    # ~32 MiB on v5e/v6e (128 MiB VMEM).
    budget = vmem_cap // 4

    cc, ts = _choose_stage1_tiles(B, L, C, HW, itemsize, budget)
    n_c = pl.cdiv(C, cc)
    n_s = pl.cdiv(HW, ts)
    sub_in = 32 // itemsize

    # Padding-aware VMEM accounting: bytes per buffer x buffer count, summed
    # once, plus modest headroom (no double counting of the double buffer).
    in_blk = 2 * L * _ceil_to(cc, sub_in) * _ceil_to(ts, LANE) * itemsize
    out_blk = 2 * _ceil_to(2, 8) * _ceil_to(ts, LANE) * 4
    scr = 2 * _ceil_to(1, 8) * _ceil_to(ts, LANE) * 4
    vmem1 = min(int(0.7 * vmem_cap),
                max(16 << 20, in_blk + out_blk + scr + (4 << 20)))

    x_flat = inputs.reshape(B, L, C, HW)             # free, contiguous reshape

    stage1 = pl.pallas_call(
        functools.partial(_stage1_kernel, c_total=C, c_block=cc,
                          mask_tail=(C % cc) != 0),
        out_shape=jax.ShapeDtypeStruct((B, 2, HW), jnp.float32),
        grid=(B, n_s, n_c),
        in_specs=[pl.BlockSpec((1, L, cc, ts), lambda b, s, c: (b, 0, c, s))],
        out_specs=pl.BlockSpec((1, 2, ts), lambda b, s, c: (b, 0, s)),
        scratch_shapes=[pltpu.VMEM((1, ts), jnp.float32),
                        pltpu.VMEM((1, ts), jnp.float32)],
        compiler_params=pltpu.CompilerParams(
            dimension_semantics=("parallel", "parallel", "arbitrary"),
            vmem_limit_bytes=vmem1),
    )
    am = stage1(x_flat)                              # (B, 2, HW) f32

    # ---- stage 2: tiny 5x 7x7 conv + softmax on the (B, 2, H, W) maps ------
    R = _choose_row_tile(H, W)
    H_pad = _ceil_to(H, R)
    n_r = H_pad // R
    am2d = am.reshape(B, 2, H, W)
    # Zero-pad a tiny tensor (B*2*(H+6)*(W+6) f32); H is also padded up to a
    # multiple of the row tile so every row-block's halo read stays in bounds.
    amp = jnp.pad(am2d, ((0, 0), (0, 0),
                         (PAD, PAD + (H_pad - H)), (PAD, PAD)))
    w_flat = weights.reshape(-1).astype(jnp.float32)

    in2 = 2 * 2 * _ceil_to(H_pad + 2 * PAD, 8) * _ceil_to(W + 2 * PAD, LANE) * 4
    out2 = 2 * M * _ceil_to(R, 8) * _ceil_to(W, LANE) * 4
    vmem2 = min(int(0.7 * vmem_cap), max(8 << 20, in2 + out2 + (4 << 20)))

    stage2 = pl.pallas_call(
        functools.partial(_conv_softmax_kernel, rows=R, width=W),
        out_shape=jax.ShapeDtypeStruct((B, M, H_pad, W), jnp.float32),
        grid=(B, n_r),
        in_specs=[
            pl.BlockSpec(memory_space=pltpu.MemorySpace.SMEM),      # weights
            pl.BlockSpec((1, 2, H_pad + 2 * PAD, W + 2 * PAD),
                         lambda b, r: (b, 0, 0, 0)),                # resident
        ],
        out_specs=pl.BlockSpec((1, M, R, W), lambda b, r: (b, 0, r, 0)),
        compiler_params=pltpu.CompilerParams(
            dimension_semantics=("parallel", "parallel"),
            vmem_limit_bytes=vmem2),
    )
    attn = stage2(w_flat, amp)[:, :, :H, :]          # drop the row padding

    # PyTorch: attention_vectors.unsqueeze(2)
    return attn[:, :, None, :, :]


# Pure-JAX reference for correctness checking.
def _ref_forward(inputs, weights):
    s = jnp.sum(inputs.astype(jnp.float32), axis=1)           # (B, C, H, W)
    avg = jnp.mean(s, axis=1, keepdims=True)
    mx = jnp.max(s, axis=1, keepdims=True)
    x = jnp.concatenate([avg, mx], axis=1)                    # (B, 2, H, W)
    y = jax.lax.conv_general_dilated(
        x, weights.astype(jnp.float32), window_strides=(1, 1),
        padding=[(PAD, PAD), (PAD, PAD)],
        dimension_numbers=("NCHW", "OIHW", "NCHW"))
    a = jax.nn.softmax(y, axis=1)
    return a[:, :, None, :, :]


if __name__ == "__main__":
    key = jax.random.PRNGKey(0)
    k_in, k_w = jax.random.split(key)

    B, L, C, H, W = 2, 5, 4, 16, 16          # L == num_levels
    inputs = jax.random.normal(k_in, (B, L, C, H, W), dtype=jnp.float32)

    # Deterministic conv weights: 5 filters of shape (2, 7, 7), no bias
    # (kaiming-uniform-like bound, same shape as the PyTorch ModuleList).
    fan_in = 2 * KSIZE * KSIZE
    bound = 1.0 / jnp.sqrt(jnp.float32(fan_in))
    weights = jax.random.uniform(k_w, (M, 2, KSIZE, KSIZE),
                                 minval=-bound, maxval=bound,
                                 dtype=jnp.float32)

    out = spatial_attention_forward(inputs, weights, num_levels=L)
    out = jax.block_until_ready(out)

    ref = jax.block_until_ready(_ref_forward(inputs, weights))
    assert out.shape == (B, M, 1, H, W)
    # Exact reciprocal in the softmax now -> tight tolerance.
    assert jnp.allclose(out, ref, rtol=1e-5, atol=1e-5), \
        f"max abs err {jnp.max(jnp.abs(out - ref))}"

    print("KERNEL_OK")
</pallas_src>

<mosaic_0001>
module attributes {stable_mosaic.version = 11 : i64} {
  func.func @_stage1_kernel(%arg0: i32, %arg1: i32, %arg2: i32, %arg3: memref<1x5x4x256xf32, #tpu.memory_space<vmem>>, %arg4: memref<1x2x256xf32, #tpu.memory_space<vmem>>, %arg5: memref<1x256xf32, #tpu.memory_space<vmem>>, %arg6: memref<1x256xf32, #tpu.memory_space<vmem>>) attributes {dimension_semantics = [#tpu.dimension_semantics<parallel>, #tpu.dimension_semantics<parallel>, #tpu.dimension_semantics<arbitrary>], iteration_bounds = array<i64: 2, 1, 1>, scalar_prefetch = 0 : i64, scratch_operands = 2 : i64, tpu.core_type = #tpu.core_type<tc>, window_params = [{transform_indices = @transform_0, window_bounds = array<i64: 1, 5, 4, 256>}, {transform_indices = @transform_1, window_bounds = array<i64: 1, 2, 256>}]} {
    %c0 = arith.constant 0 : index
    %c0_0 = arith.constant 0 : index
    %c0_1 = arith.constant 0 : index
    %c0_2 = arith.constant 0 : index
    %0 = vector.load %arg3[%c0, %c0_0, %c0_1, %c0_2] : memref<1x5x4x256xf32, #tpu.memory_space<vmem>>, vector<1x5x4x256xf32>
    %1 = vector.shape_cast %0 : vector<1x5x4x256xf32> to vector<5x4x256xf32>
    %cst = arith.constant dense<0.000000e+00> : vector<4x256xf32>
    %2 = vector.multi_reduction <add>, %1, %cst [0] : vector<5x4x256xf32> to vector<4x256xf32>
    %cst_3 = arith.constant dense<0.000000e+00> : vector<256xf32>
    %3 = vector.multi_reduction <add>, %2, %cst_3 [0] : vector<4x256xf32> to vector<256xf32>
    %4 = vector.shape_cast %3 : vector<256xf32> to vector<1x256xf32>
    %cst_4 = arith.constant dense<0xFF800000> : vector<256xf32>
    %5 = vector.multi_reduction <maximumf>, %2, %cst_4 [0] : vector<4x256xf32> to vector<256xf32>
    %6 = vector.shape_cast %5 : vector<256xf32> to vector<1x256xf32>
    %c0_i32 = arith.constant 0 : i32
    %7 = arith.cmpi eq, %arg2, %c0_i32 : i32
    %8 = arith.extui %7 : i1 to i32
    %c0_i32_5 = arith.constant 0 : i32
    %9 = arith.cmpi ne, %8, %c0_i32_5 : i32
    scf.if %9 {
      %c0_10 = arith.constant 0 : index
      %c0_11 = arith.constant 0 : index
      %16 = vector.load %arg5[%c0_10, %c0_11] : memref<1x256xf32, #tpu.memory_space<vmem>>, vector<1x256xf32>
      tpu.vector_store %arg5[%c0_10, %c0_11], %4 {strides = array<i32>} : memref<1x256xf32, #tpu.memory_space<vmem>>, vector<1x256xf32>,
      %c0_12 = arith.constant 0 : index
      %c0_13 = arith.constant 0 : index
      %17 = vector.load %arg6[%c0_12, %c0_13] : memref<1x256xf32, #tpu.memory_space<vmem>>, vector<1x256xf32>
      tpu.vector_store %arg6[%c0_12, %c0_13], %6 {strides = array<i32>} : memref<1x256xf32, #tpu.memory_space<vmem>>, vector<1x256xf32>,
    } else {
    }
    %c0_i32_6 = arith.constant 0 : i32
    %10 = arith.cmpi ne, %arg2, %c0_i32_6 : i32
    %11 = arith.extui %10 : i1 to i32
    %c0_i32_7 = arith.constant 0 : i32
    %12 = arith.cmpi ne, %11, %c0_i32_7 : i32
    scf.if %12 {
      %c0_10 = arith.constant 0 : index
      %c0_11 = arith.constant 0 : index
      %16 = vector.load %arg5[%c0_10, %c0_11] : memref<1x256xf32, #tpu.memory_space<vmem>>, vector<1x256xf32>
      %17 = arith.addf %16, %4 : vector<1x256xf32>
      %c0_12 = arith.constant 0 : index
      %c0_13 = arith.constant 0 : index
      %18 = vector.load %arg5[%c0_12, %c0_13] : memref<1x256xf32, #tpu.memory_space<vmem>>, vector<1x256xf32>
      tpu.vector_store %arg5[%c0_12, %c0_13], %17 {strides = array<i32>} : memref<1x256xf32, #tpu.memory_space<vmem>>, vector<1x256xf32>,
      %c0_14 = arith.constant 0 : index
      %c0_15 = arith.constant 0 : index
      %19 = vector.load %arg6[%c0_14, %c0_15] : memref<1x256xf32, #tpu.memory_space<vmem>>, vector<1x256xf32>
      %20 = arith.maximumf %19, %6 : vector<1x256xf32>
      %c0_16 = arith.constant 0 : index
      %c0_17 = arith.constant 0 : index
      %21 = vector.load %arg6[%c0_16, %c0_17] : memref<1x256xf32, #tpu.memory_space<vmem>>, vector<1x256xf32>
      tpu.vector_store %arg6[%c0_16, %c0_17], %20 {strides = array<i32>} : memref<1x256xf32, #tpu.memory_space<vmem>>, vector<1x256xf32>,
    } else {
    }
    %c0_i32_8 = arith.constant 0 : i32
    %13 = arith.cmpi eq, %arg2, %c0_i32_8 : i32
    %14 = arith.extui %13 : i1 to i32
    %c0_i32_9 = arith.constant 0 : i32
    %15 = arith.cmpi ne, %14, %c0_i32_9 : i32
    scf.if %15 {
      %c0_10 = arith.constant 0 : index
      %c0_11 = arith.constant 0 : index
      %16 = vector.load %arg5[%c0_10, %c0_11] : memref<1x256xf32, #tpu.memory_space<vmem>>, vector<1x256xf32>
      %cst_12 = arith.constant 2.500000e-01 : f32
      %17 = vector.broadcast %cst_12 : f32 to vector<1x256xf32>
      %18 = arith.mulf %16, %17 : vector<1x256xf32>
      %c0_13 = arith.constant 0 : index
      %c0_14 = arith.constant 0 : index
      %19 = vector.load %arg6[%c0_13, %c0_14] : memref<1x256xf32, #tpu.memory_space<vmem>>, vector<1x256xf32>
      %20 = tpu.concatenate %18, %19 in 0 : vector<1x256xf32>, vector<1x256xf32> -> vector<2x256xf32>
      %c0_15 = arith.constant 0 : index
      %c0_16 = arith.constant 0 : index
      %c0_17 = arith.constant 0 : index
      %21 = vector.load %arg4[%c0_15, %c0_16, %c0_17] : memref<1x2x256xf32, #tpu.memory_space<vmem>>, vector<1x2x256xf32>
      %22 = vector.shape_cast %21 : vector<1x2x256xf32> to vector<2x256xf32>
      %23 = vector.shape_cast %20 : vector<2x256xf32> to vector<1x2x256xf32>
      tpu.vector_store %arg4[%c0_15, %c0_16, %c0_17], %23 {strides = array<i32>} : memref<1x2x256xf32, #tpu.memory_space<vmem>>, vector<1x2x256xf32>,
    } else {
    }
    return
  }
  func.func @transform_0(%arg0: i32, %arg1: i32, %arg2: i32) -> (i32, i32, i32, i32) {
    %c0_i32 = arith.constant 0 : i32
    %c0_i32_0 = arith.constant 0 : i32
    return %arg0, %c0_i32, %arg2, %arg1 : i32, i32, i32, i32
  }
  func.func @transform_1(%arg0: i32, %arg1: i32, %arg2: i32) -> (i32, i32, i32) {
    %c0_i32 = arith.constant 0 : i32
    %c0_i32_0 = arith.constant 0 : i32
    return %arg0, %c0_i32, %arg1 : i32, i32, i32
  }
}

</mosaic_0001>

<llo_original>
// kernel: tpu_custom_call.1
$region0: #{tpu_custom_call.1}
  #allocation0 [shape = 'u32[]', space=smem, size = 0x4, offset = 0x4, fixed_abs, tag = 'smem constant byte address 0x4 - core index']
  #allocation1 [shape = 'u32[144,128]{1,0:T(1,128)}', space=vmem, size = 0x12000, scoped, tag = 'internal scratch']
  #allocation2 [shape = 'f32[1,256]{1,0:T(1,128)}', space=vmem, size = 0x400, scoped, tag = 'scratch operand']
  #allocation3 [shape = 'f32[1,256]{1,0:T(1,128)}', space=vmem, size = 0x400, scoped, tag = 'scratch operand']
  %s0 = inlined_call_operand.hbm [shape: f32[2,5,4,256], index: 0, kind: input, shape index: {}]
  %s1 = inlined_call_operand.hbm [shape: f32[2,2,256], index: 1, kind: output, shape index: {}]
  %s2 = sld [smem:[#allocation0]]
  $region53: #{tpu_custom_call.1} parent=0
    _
  %s4 = ssub.s32 1, %s2
  %s5 = scalar_select 0, %s4, %s2
  $region1: #{tpu_custom_call.1} parent=0
    #allocation4 [shape = 'u8[40960]{0}', space=vmem, size = 0xa000, scoped, tag = 'input window, operand 0']
    #allocation5 [shape = 's32[2]{0}', space=sflag, size = 0x8, scoped, tag = 'scoped memory for tpu_custom_call.1']
    #allocation6 [shape = 's32[2]{0}', space=sflag, size = 0x8, scoped, tag = 'scoped memory for tpu_custom_call.1']
    #allocation7 [shape = 'u8[4096]{0}', space=vmem, size = 0x1000, scoped, tag = 'output window, operand 0']
    %6 = vsyncpa [#allocation5], 0
    %s7 = scalar_lea.sflag [#allocation5], 1
    %8 = vsyncpa %s7, 0
    %9 = vsyncpa [#allocation6], 0
    %s10 = scalar_lea.sflag [#allocation6], 1
    %11 = vsyncpa %s10, 0
    loop: start=0, step=1, limit=4
    $region2: #{tpu_custom_call.1} parent=1 // loop_pre_header
      _
    $region3: #{tpu_custom_call.1} parent=1 // loop_header
      %s13 = sphi 0, %s17
      %p14 = scmp.ge.s32.totalorder %s13, 4
      %s20 = sphi 0, %s39
      %s21 = sphi 0, %s35
      %s22 = sphi 0, %s31
      %s23 = sphi 0, %s20
      %s24 = sphi 0, %s21
      %s25 = sphi 0, %s22
      %s26 = sphi 0, %s23
      %s27 = sphi 0, %s24
      %s28 = sphi 0, %s25
      %s46 = sphi 0, %s48
      %s49 = sphi 0, %s46
      %s50 = sphi 0, %s49
      %s66 = sphi 0, %s50
      %s74 = sphi 0, %s76
      %s77 = sphi 0, %s74
      %s78 = sphi 0, %s77
      %s94 = sphi 0, %s78
    $region4: #{tpu_custom_call.1} parent=1 // loop_header_branch
      %16 = sbr.rel (%p14) target = $region8
    $region5: #{tpu_custom_call.1} parent=1 // loop_body
      %s18 = ssub.s32 %s13, 1
      %s19 = ssub.s32 %s13, 2
      %s29 = sadd.s32 1, %s22
      %p30 = scmp.ge.s32.totalorder %s29, 1
      %s31 = scalar_select %p30, 0, %s29
      %s32 = sadd.s32 1, %s21
      %s33 = scalar_select %p30, %s32, %s21
      %p34 = scmp.ge.s32.totalorder %s33, 1
      %s35 = scalar_select %p34, 0, %s33
      %s36 = sadd.s32 1, %s20
      %s37 = scalar_select %p34, %s36, %s20
      %p38 = scmp.ge.s32.totalorder %s37, 2
      %s39 = scalar_select %p38, 0, %s37
      %s40 = ssub.s32 %s20, %s39
      %s41 = ssub.s32 %s22, %s31
      %s42 = sor.u32 %s40, %s41
      %s43 = ssub.s32 %s21, %s35
      %s44 = sor.u32 %s42, %s43
      %p45 = scmp.eq.s32.totalorder %s44, 0
      %s47 = sadd.s32 %s46, 1
      %s48 = scalar_select %p45, %s46, %s47
      %p51 = pneg %p45
      %p52 = scmp.eq.s32.totalorder %s13, 1
      %p53 = por %p51, %p52
      %p54 = scmp.ne.s32.totalorder %s46, %s49
      %p55 = scmp.eq.s32.totalorder %s13, 0
      %p56 = por %p54, %p55
      %p57 = scmp.ne.s32.totalorder %s46, %s49
      %p58 = scmp.eq.s32.totalorder %s18, 1
      %p59 = por %p57, %p58
      %p60 = scmp.ne.s32.totalorder %s49, %s50
      %p61 = scmp.eq.s32.totalorder %s18, 0
      %p62 = por %p60, %p61
      %p63 = scmp.ne.s32.totalorder %s49, %s50
      %p64 = scmp.eq.s32.totalorder %s19, 1
      %p65 = por %p63, %p64
      %p67 = scmp.ne.s32.totalorder %s50, %s66
      %p68 = scmp.eq.s32.totalorder %s19, 0
      %p69 = por %p67, %p68
      %s70 = ssub.s32 %s20, %s39
      %s71 = ssub.s32 %s21, %s35
      %s72 = sor.u32 %s70, %s71
      %p73 = scmp.eq.s32.totalorder %s72, 0
      %s75 = sadd.s32 %s74, 1
      %s76 = scalar_select %p73, %s74, %s75
      %p79 = pneg %p73
      %p80 = scmp.eq.s32.totalorder %s13, 1
      %p81 = por %p79, %p80
      %p82 = scmp.ne.s32.totalorder %s74, %s77
      %p83 = scmp.eq.s32.totalorder %s13, 0
      %p84 = por %p82, %p83
      %p85 = scmp.ne.s32.totalorder %s74, %s77
      %p86 = scmp.eq.s32.totalorder %s18, 1
      %p87 = por %p85, %p86
      %p88 = scmp.ne.s32.totalorder %s77, %s78
      %p89 = scmp.eq.s32.totalorder %s18, 0
      %p90 = por %p88, %p89
      %p91 = scmp.ne.s32.totalorder %s77, %s78
      %p92 = scmp.eq.s32.totalorder %s19, 1
      %p93 = por %p91, %p92
      %p95 = scmp.ne.s32.totalorder %s78, %s94
      %p96 = scmp.eq.s32.totalorder %s19, 0
      %p97 = por %p95, %p96
      %p98 = scmp.le.s32.totalorder 1, %s13
      %p99 = scmp.lt.s32.totalorder %s13, 3
      %p100 = pnand %p98, %p99
      %p101 = pneg %p100
      // Predicated region
      $region9: #{tpu_custom_call.1} parent=5 // pred_check
        _
      $region10: #{tpu_custom_call.1} parent=5 // pred_check_branch
        %103 = sbr.rel (%p100) target = $region12
      $region11: #{tpu_custom_call.1} parent=5 // pred_region
        %s104 = ssub.s32 %s13, 1
      $region12: #{tpu_custom_call.1} parent=5 // pred_fallthru
        _
      %p105 = scmp.lt.s32.totalorder %s13, 2
      // Predicated region
      $region13: #{tpu_custom_call.1} parent=5 // pred_check
        %p106 = pneg %p105
      $region14: #{tpu_custom_call.1} parent=5 // pred_check_branch
        %108 = sbr.rel (%p106) target = $region16
      $region15: #{tpu_custom_call.1} parent=5 // pred_region
        // Predicated region
        $region17: #{tpu_custom_call.1} parent=15 // pred_check
          %p109 = pneg %p56
        $region18: #{tpu_custom_call.1} parent=15 // pred_check_branch
          %111 = sbr.rel (%p109) target = $region20
        $region19: #{tpu_custom_call.1} parent=15 // pred_region
          %s112 = sand.u32 %s46, 1
          %s113 = scalar_lea.sflag [#allocation5], %s112
          %s114 = sand.u32 %s46, 1
          %s115 = smul.addr %s114, 40
          %s116 = scalar_lea.vmem [#allocation4], %s115
          %s117 = smul.u32 2, %s21
          %s119 = ssub.s32 640, 640
          %120 = vsyncadd %s113, %s119
          %s121 = smul.addr %s22, 2
          %s122 = sadd.s32 %s117, %s121
          %s123 = smul.addr %s20, 10
          %s124 = sadd.s32 %s122, %s123
          %s125 = smul.addr %s124, 64
          %s126 = scalar_lea.hbm %s0, %s125
          %s127 = sshll.u32 %s116, 4
          %s128 = int_to_ptr.vmem [resolvable:$true] %s127
          %133 = dma.hbm_to_vmem [thread:$0]  %s126, 640, %s128, %s113, 128, 128, 8
        $region20: #{tpu_custom_call.1} parent=15 // pred_fallthru
          _
      $region16: #{tpu_custom_call.1} parent=5 // pred_fallthru
        _
      %p134 = scmp.le.s32.totalorder 1, %s13
      %p135 = scmp.lt.s32.totalorder %s13, 3
      %p136 = pnand %p134, %p135
      %p137 = pneg %p136
      // Predicated region
      $region21: #{tpu_custom_call.1} parent=5 // pred_check
        _
      $region22: #{tpu_custom_call.1} parent=5 // pred_check_branch
        %139 = sbr.rel (%p136) target = $region24
      $region23: #{tpu_custom_call.1} parent=5 // pred_region
        %s140 = ssub.s32 %s13, 1
        %s141 = sand.u32 %s49, 1
        %s142 = scalar_lea.sflag [#allocation5], %s141
        %s143 = sand.u32 %s49, 1
        %s144 = smul.addr %s143, 40
        %s145 = scalar_lea.vmem [#allocation4], %s144
        // Predicated region
        $region25: #{tpu_custom_call.1} parent=23 // pred_check
          %p146 = pneg %p62
        $region26: #{tpu_custom_call.1} parent=23 // pred_check_branch
          %148 = sbr.rel (%p146) target = $region28
        $region27: #{tpu_custom_call.1} parent=23 // pred_region
          %149 = dma.done %s142, 640
        $region28: #{tpu_custom_call.1} parent=23 // pred_fallthru
          _
        %s150 = sand.u32 %s49, 1
        %s151 = scalar_lea.sflag [#allocation5], %s150
        %s152 = sand.u32 %s49, 1
        %s153 = smul.addr %s152, 40
        %s154 = scalar_lea.vmem [#allocation4], %s153
        %p155 = pneg %p62
        %p156 = pneg %p59
        %p157 = pneg %p90
        %p158 = pneg %p87
        %s159 = sand.u32 %s77, 1
        %s160 = scalar_lea.sflag [#allocation6], %s159
        %s161 = sand.u32 %s77, 1
        %s162 = smul.addr %s161, 4
        %s163 = scalar_lea.vmem [#allocation7], %s162
        %s164 = smul.u32 2, %s24
        %s165 = smul.u32 2, %s24
        %v166 = vld [vmem:[%s145] sm:$0xff]
        %v167 = vld [vmem:[%s145 + $0x8] sm:$0xff]
        %v168 = vld [vmem:[%s145 + $0x10] sm:$0xff]
        %v169 = vld [vmem:[%s145 + $0x18] sm:$0xff]
        %v170 = vld [vmem:[%s145 + $0x20] sm:$0xff]
        %v176 = vcombine.high %v166, %v166
        %v177 = vcombine.high %v167, %v167
        %v178 = vcombine.high %v168, %v168
        %v179 = vcombine.high %v169, %v169
        %v180 = vcombine.high %v170, %v170
        %vm186 = vcmask 1043456
        %v187 = vsel %vm186, %v166, 0.0
        %v188 = vsel %vm186, %v167, 0.0
        %v189 = vadd.f32 %v187, %v188
        %v190 = vsel %vm186, %v168, 0.0
        %v191 = vadd.f32 %v189, %v190
        %v192 = vsel %vm186, %v169, 0.0
        %v193 = vadd.f32 %v191, %v192
        %v194 = vsel %vm186, %v170, 0.0
        %v195 = vadd.f32 %v193, %v194
        %v196 = vsel %vm186, %v176, 0.0
        %v197 = vsel %vm186, %v177, 0.0
        %v198 = vadd.f32 %v196, %v197
        %v199 = vsel %vm186, %v178, 0.0
        %v200 = vadd.f32 %v198, %v199
        %v201 = vsel %vm186, %v179, 0.0
        %v202 = vadd.f32 %v200, %v201
        %v203 = vsel %vm186, %v180, 0.0
        %v204 = vadd.f32 %v202, %v203
        %v205 = vsel %vm186, %v195, 0.0
        %v206 = vrot.slane %v205, 4
        %v207 = vadd.f32 %v205, %v206
        %v208 = vrot.slane %v207, 2
        %v209 = vadd.f32 %v207, %v208
        %v210 = vrot.slane %v209, 1
        %v211 = vadd.f32 %v209, %v210
        %v212 = vsel %vm186, %v204, 0.0
        %v213 = vrot.slane %v212, 4
        %v214 = vadd.f32 %v212, %v213
        %v215 = vrot.slane %v214, 2
        %v216 = vadd.f32 %v214, %v215
        %v217 = vrot.slane %v216, 1
        %v218 = vadd.f32 %v216, %v217
        %v219 = vsel %vm186, %v195, -inf
        %v220 = vrot.slane %v219, 4
        %v221 = vmax.f32 %v219, %v220
        %v222 = vrot.slane %v221, 2
        %v223 = vmax.f32 %v221, %v222
        %v224 = vrot.slane %v223, 1
        %v225 = vmax.f32 %v223, %v224
        %v226 = vsel %vm186, %v204, -inf
        %v227 = vrot.slane %v226, 4
        %v228 = vmax.f32 %v226, %v227
        %v229 = vrot.slane %v228, 2
        %v230 = vmax.f32 %v228, %v229
        %v231 = vrot.slane %v230, 1
        %v232 = vmax.f32 %v230, %v231
        %p233 = scmp.eq.s32.totalorder %s25, 0
        // Predicated region
        $region29: #{tpu_custom_call.1} parent=23 // pred_check
          %p234 = pneg %p233
        $region30: #{tpu_custom_call.1} parent=23 // pred_check_branch
          %236 = sbr.rel (%p234) target = $region32
        $region31: #{tpu_custom_call.1} parent=23 // pred_region
          %v239 = vcombine.low %v211, %v218
          %v241 = vunpack.c.l.s4 1966171168
          %v242 = vunpack.c.0.s8 %v241
          %v243 = vlaneseq
          %v244 = vshrl.u32 %v243, 7
          %v245 = vsub.s32 %v242, %v244
          %v246 = vrot.slane %v239, %v245
          %v248 = vunpack.c.l.s4 1966171168
          %v249 = vunpack.c.0.s8 %v248
          %v250 = vlaneseq
          %v251 = vshrl.u32 %v250, 7
          %v252 = vsub.s32 %v249, %v251
          %v253 = vrot.slane %v246, %v252
          %v255 = vlaneseq
          %vm256 = vcmp.ge.s32.totalorder %v255, 0
          %vm257 = vcmp.lt.s32.totalorder %v255, 256
          %vm258 = vmand %vm256, %vm257
          %259 = vst.msk [vmem:[#allocation2] sm:$0x3] %vm258, %v253
          %v262 = vcombine.low %v225, %v232
          %v264 = vunpack.c.l.s4 1966171168
          %v265 = vunpack.c.0.s8 %v264
          %v266 = vlaneseq
          %v267 = vshrl.u32 %v266, 7
          %v268 = vsub.s32 %v265, %v267
          %v269 = vrot.slane %v262, %v268
          %v271 = vunpack.c.l.s4 1966171168
          %v272 = vunpack.c.0.s8 %v271
          %v273 = vlaneseq
          %v274 = vshrl.u32 %v273, 7
          %v275 = vsub.s32 %v272, %v274
          %v276 = vrot.slane %v269, %v275
          %278 = vst.msk [vmem:[#allocation3] sm:$0x3] %vm258, %v276
        $region32: #{tpu_custom_call.1} parent=23 // pred_fallthru
          _
        %p279 = scmp.ne.s32.totalorder %s25, 0
        // Predicated region
        $region33: #{tpu_custom_call.1} parent=23 // pred_check
          %p280 = pneg %p279
        $region34: #{tpu_custom_call.1} parent=23 // pred_check_branch
          %282 = sbr.rel (%p280) target = $region36
        $region35: #{tpu_custom_call.1} parent=23 // pred_region
          %v283 = vld [vmem:[#allocation2] sm:$0x3]
          %v286 = vcombine.low %v211, %v218
          %v288 = vunpack.c.l.s4 1966171168
          %v289 = vunpack.c.0.s8 %v288
          %v290 = vlaneseq
          %v291 = vshrl.u32 %v290, 7
          %v292 = vsub.s32 %v289, %v291
          %v293 = vrot.slane %v286, %v292
          %v295 = vunpack.c.l.s4 1966171168
          %v296 = vunpack.c.0.s8 %v295
          %v297 = vlaneseq
          %v298 = vshrl.u32 %v297, 7
          %v299 = vsub.s32 %v296, %v298
          %v300 = vrot.slane %v293, %v299
          %v302 = vadd.f32 %v283, %v300
          %v303 = vlaneseq
          %vm304 = vcmp.ge.s32.totalorder %v303, 0
          %vm305 = vcmp.lt.s32.totalorder %v303, 256
          %vm306 = vmand %vm304, %vm305
          %307 = vst.msk [vmem:[#allocation2] sm:$0x3] %vm306, %v302
          %v308 = vld [vmem:[#allocation3] sm:$0x3]
          %v311 = vcombine.low %v225, %v232
          %v313 = vunpack.c.l.s4 1966171168
          %v314 = vunpack.c.0.s8 %v313
          %v315 = vlaneseq
          %v316 = vshrl.u32 %v315, 7
          %v317 = vsub.s32 %v314, %v316
          %v318 = vrot.slane %v311, %v317
          %v320 = vunpack.c.l.s4 1966171168
          %v321 = vunpack.c.0.s8 %v320
          %v322 = vlaneseq
          %v323 = vshrl.u32 %v322, 7
          %v324 = vsub.s32 %v321, %v323
          %v325 = vrot.slane %v318, %v324
          %v327 = vmax.f32 %v308, %v325
          %328 = vst.msk [vmem:[#allocation3] sm:$0x3] %vm306, %v327
        $region36: #{tpu_custom_call.1} parent=23 // pred_fallthru
          _
        // Predicated region
        $region37: #{tpu_custom_call.1} parent=23 // pred_check
          %p329 = pneg %p233
        $region38: #{tpu_custom_call.1} parent=23 // pred_check_branch
          %331 = sbr.rel (%p329) target = $region40
        $region39: #{tpu_custom_call.1} parent=23 // pred_region
          %v332 = vld [vmem:[#allocation2] sm:$0x3]
          %v333 = vmul.f32 %v332, 0.25
          %v334 = vld [vmem:[#allocation3] sm:$0x3]
          %v336 = vlaneseq
          %v337 = vshrl.u32 %v336, 7
          %v338 = vsub.s32 0, %v337
          %v339 = vrot.slane %v333, %v338
          %v340 = vlaneseq
          %v341 = vshrl.u32 %v340, 7
          %v342 = vsub.s32 1, %v341
          %v343 = vrot.slane %v333, %v342
          %v347 = vlaneseq
          %v348 = vshrl.u32 %v347, 7
          %v349 = vsub.s32 0, %v348
          %v350 = vrot.slane %v334, %v349
          %v351 = vlaneseq
          %v352 = vshrl.u32 %v351, 7
          %v353 = vsub.s32 1, %v352
          %v354 = vrot.slane %v334, %v353
          %vm357 = vcmask 1040384
          %v358 = vsel %vm357, %v339, %v350
          %v359 = vsel %vm357, %v343, %v354
          %v362 = vcombine.low %v358, %v359
          %v364 = vunpack.c.l.s4 1983009808
          %v365 = vunpack.c.0.s8 %v364
          %v366 = vlaneseq
          %v367 = vshrl.u32 %v366, 7
          %v368 = vsub.s32 %v365, %v367
          %v369 = vrot.slane %v362, %v368
          %371 = vst [vmem:[%s163] sm:$0xf] %v369
        $region40: #{tpu_custom_call.1} parent=23 // pred_fallthru
          _
        %s372 = sand.u32 %s77, 1
        %s373 = scalar_lea.sflag [#allocation6], %s372
        %s374 = sand.u32 %s77, 1
        %s375 = smul.addr %s374, 4
        %s376 = scalar_lea.vmem [#allocation7], %s375
        // Predicated region
        $region41: #{tpu_custom_call.1} parent=23 // pred_check
          %p377 = pneg %p87
        $region42: #{tpu_custom_call.1} parent=23 // pred_check_branch
          %379 = sbr.rel (%p377) target = $region44
        $region43: #{tpu_custom_call.1} parent=23 // pred_region
          %s380 = smul.u32 2, %s24
          %s382 = ssub.s32 64, 64
          %383 = vsyncadd %s373, %s382
          %s384 = smul.addr %s23, 2
          %s385 = sadd.s32 %s380, %s384
          %s386 = smul.addr %s385, 32
          %s387 = scalar_lea.hbm %s1, %s386
          %s389 = sshll.u32 %s376, 4
          %s390 = int_to_ptr.vmem [resolvable:$true] %s389
          %392 = dma.vmem_to_hbm [thread:$0]  %s390, 64, %s387, %s373
        $region44: #{tpu_custom_call.1} parent=23 // pred_fallthru
          _
      $region24: #{tpu_custom_call.1} parent=5 // pred_fallthru
        _
      %p393 = scmp.le.s32.totalorder 2, %s13
      // Predicated region
      $region45: #{tpu_custom_call.1} parent=5 // pred_check
        %p394 = pneg %p393
      $region46: #{tpu_custom_call.1} parent=5 // pred_check_branch
        %396 = sbr.rel (%p394) target = $region48
      $region47: #{tpu_custom_call.1} parent=5 // pred_region
        %s397 = ssub.s32 %s13, 2
        // Predicated region
        $region49: #{tpu_custom_call.1} parent=47 // pred_check
          %p398 = pneg %p93
        $region50: #{tpu_custom_call.1} parent=47 // pred_check_branch
          %400 = sbr.rel (%p398) target = $region52
        $region51: #{tpu_custom_call.1} parent=47 // pred_region
          %s401 = sand.u32 %s78, 1
          %s402 = scalar_lea.sflag [#allocation6], %s401
          %s403 = sand.u32 %s78, 1
          %s404 = smul.addr %s403, 4
          %s405 = scalar_lea.vmem [#allocation7], %s404
          %406 = dma.done %s402, 64
        $region52: #{tpu_custom_call.1} parent=47 // pred_fallthru
          _
      $region48: #{tpu_custom_call.1} parent=5 // pred_fallthru
        _
    $region6: #{tpu_custom_call.1} parent=1 // loop_footer
      %s17 = sadd.s32 1, %s13
    $region7: #{tpu_custom_call.1} parent=1 // loop_footer_branch
      %12 = sbr.rel target = $region3
    $region8: #{tpu_custom_call.1} parent=1 // loop_exit
      _
    %407 = vsyncpa [#allocation5], 1
    %s408 = scalar_lea.sflag [#allocation5], 1
    %409 = vsyncpa %s408, 1
    %410 = vsyncpa [#allocation6], 1
    %s411 = scalar_lea.sflag [#allocation6], 1
    %412 = vsyncpa %s411, 1

</llo_original>
